<compile_context>
chip_gen: v5e
topology: v5e:2x2
jax: 0.10.0
libtpu: 0.0.40
codegen_flags: <defaults>
</compile_context>

<pallas_src>
import jax
import jax.numpy as jnp
from jax.experimental import pallas as pl
from jax.experimental.pallas import tpu as pltpu

LANES = 128                 # lane-dense last dim -> full-width unmasked stores
MAX_BLOCK_BYTES = 4 << 20   # 4 MiB per block (8192 rows of f32 x 128 lanes)


def identity_copy_kernel(x_ref, o_ref):
    # Pure pass-through: copy one tile per grid step.
    o_ref[...] = x_ref[...]


@jax.jit
def pallas_identity(x):
    """Identity.forward(x) == x, as an aliased, tiled Pallas copy."""
    if x.size == 0:
        return x

    orig_shape = x.shape
    orig_dtype = x.dtype
    n = x.size
    itemsize = jnp.dtype(orig_dtype).itemsize

    if n % LANES == 0:
        # Lane-dense layout: last dim exactly 128 lanes.
        rows, cols = n // LANES, LANES
    else:
        # No-pad fallback: keep the natural trailing dim as a full-extent
        # (exempt) lane dim.  Costs masked stores but avoids 3x HBM traffic.
        cols = orig_shape[-1] if x.ndim >= 1 else 1
        rows = n // cols

    x2d = x.reshape(rows, cols)

    # Largest row-tile that fits the per-block budget, multiple of 8 sublanes.
    cap = max(8, (MAX_BLOCK_BYTES // (cols * itemsize)) // 8 * 8)
    if rows <= cap:
        block_rows = rows          # full-extent block: no sublane-divisibility rule
    else:
        block_rows = cap           # multiple of 8; final partial block is clipped

    grid = pl.cdiv(rows, block_rows)

    out = pl.pallas_call(
        identity_copy_kernel,
        out_shape=jax.ShapeDtypeStruct((rows, cols), orig_dtype),
        grid=(grid,),
        in_specs=[pl.BlockSpec((block_rows, cols), lambda i: (i, 0))],
        out_specs=pl.BlockSpec((block_rows, cols), lambda i: (i, 0)),
        input_output_aliases={0: 0},
        compiler_params=pltpu.CompilerParams(
            dimension_semantics=("parallel",),
            vmem_limit_bytes=32 << 20,
        ),
    )(x2d)

    return out.reshape(orig_shape)


if __name__ == "__main__":
    key = jax.random.PRNGKey(0)
    k1, k2 = jax.random.split(key)

    # Identity accepts any shape; lane-aligned example (2*4*16*16 = 2048 elems).
    x = jax.random.normal(k1, (2, 4, 16, 16), jnp.float32)
    y = jax.block_until_ready(pallas_identity(x))
    assert y.shape == x.shape and y.dtype == x.dtype
    assert jnp.array_equal(y, x)

    # Non-lane-aligned shape exercises the full-extent (no-pad) fallback path.
    x2 = jax.random.normal(k2, (3, 5, 7), jnp.float32)
    y2 = jax.block_until_ready(pallas_identity(x2))
    assert y2.shape == x2.shape and jnp.array_equal(y2, x2)

    print("KERNEL_OK")
</pallas_src>

<mosaic_0001>
module attributes {stable_mosaic.version = 11 : i64} {
  func.func @identity_copy_kernel(%arg0: i32, %arg1: memref<16x128xf32, #tpu.memory_space<vmem>>, %arg2: memref<16x128xf32, #tpu.memory_space<vmem>>) attributes {dimension_semantics = [#tpu.dimension_semantics<parallel>], iteration_bounds = array<i64: 1>, scalar_prefetch = 0 : i64, scratch_operands = 0 : i64, tpu.core_type = #tpu.core_type<tc>, window_params = [{transform_indices = @transform_0, window_bounds = array<i64: 16, 128>}, {transform_indices = @transform_1, window_bounds = array<i64: 16, 128>}]} {
    %c0 = arith.constant 0 : index
    %c0_0 = arith.constant 0 : index
    %0 = vector.load %arg1[%c0, %c0_0] : memref<16x128xf32, #tpu.memory_space<vmem>>, vector<16x128xf32>
    %c0_1 = arith.constant 0 : index
    %c0_2 = arith.constant 0 : index
    %1 = vector.load %arg2[%c0_1, %c0_2] : memref<16x128xf32, #tpu.memory_space<vmem>>, vector<16x128xf32>
    tpu.vector_store %arg2[%c0_1, %c0_2], %0 {strides = array<i32>} : memref<16x128xf32, #tpu.memory_space<vmem>>, vector<16x128xf32>,
    return
  }
  func.func @transform_0(%arg0: i32) -> (i32, i32) {
    %c0_i32 = arith.constant 0 : i32
    %c0_i32_0 = arith.constant 0 : i32
    return %arg0, %c0_i32 : i32, i32
  }
  func.func @transform_1(%arg0: i32) -> (i32, i32) {
    %c0_i32 = arith.constant 0 : i32
    %c0_i32_0 = arith.constant 0 : i32
    return %arg0, %c0_i32 : i32, i32
  }
}

</mosaic_0001>

<llo_original>
// kernel: pallas_identity.1
$region0: #{pallas_identity.1}
  #allocation0 [shape = 'u32[]', space=smem, size = 0x4, offset = 0x4, fixed_abs, tag = 'smem constant byte address 0x4 - core index']
  #allocation1 [shape = 'u32[72,128]{1,0:T(1,128)}', space=vmem, size = 0x9000, scoped, tag = 'internal scratch']
  %s0 = inlined_call_operand.vmem [shape: f32[16,128], index: 0, kind: input, shape index: {}, may-alias: {0,1}]
  %s1 = inlined_call_operand.vmem [shape: f32[16,128], index: 1, kind: output, shape index: {}, may-alias: {0,1}]
  %s2 = sld [smem:[#allocation0]]
  $region14: #{pallas_identity.1} parent=0
    _
  %s4 = ssub.s32 1, %s2
  %s5 = scalar_select 0, %s4, %s2
  // Predicated region
  $region2: #{pallas_identity.1} parent=0 // pred_check
    _
  $region3: #{pallas_identity.1} parent=0 // pred_check_branch
    %7 = sbr.rel (0) target = $region5
  $region4: #{pallas_identity.1} parent=0 // pred_region
    _
  $region5: #{pallas_identity.1} parent=0 // pred_fallthru
    _
  %v8 = vld [vmem:[%s0] sm:$0xff]
  %v9 = vld [vmem:[%s0 + $0x8] sm:$0xff]
  %10 = vst [vmem:[%s1] sm:$0xff] %v8
  %11 = vst [vmem:[%s1 + $0x8] sm:$0xff] %v9
  // Predicated region
  $region6: #{pallas_identity.1} parent=0 // pred_check
    _
  $region7: #{pallas_identity.1} parent=0 // pred_check_branch
    %13 = sbr.rel (0) target = $region9
  $region8: #{pallas_identity.1} parent=0 // pred_region
    _
  $region9: #{pallas_identity.1} parent=0 // pred_fallthru
    _
  // Predicated region
  $region10: #{pallas_identity.1} parent=0 // pred_check
    _
  $region11: #{pallas_identity.1} parent=0 // pred_check_branch
    %15 = sbr.rel (0) target = $region13
  $region12: #{pallas_identity.1} parent=0 // pred_region
    _
  $region13: #{pallas_identity.1} parent=0 // pred_fallthru
    _

</llo_original>
